<compile_context>
chip_gen: v7x
topology: tpu7x:2x2x1
jax: 0.10.0
libtpu: 0.0.40
codegen_flags: <defaults>
</compile_context>

<pallas_src>
import functools

import numpy as np
import jax
import jax.numpy as jnp
from jax.experimental import pallas as pl
from jax.experimental.pallas import tpu as pltpu


# ---------------- stand-in for `config.net` ----------------
RAW_INPUT_DIM = 16
FEAT_INPUT_DIM = 16
RAW_HIDDEN_DIM = 32
RAW_HIDDEN_DIM_2 = 32
RAW_LINEAR_DIM = 32
FEAT_LINEAR_DIM = 32
OUTPUT_DIM = 32
PROMPT_DIM = 16
ALPHA = 0.5
N_PROMPT_DICT = 6
EPS = 1e-12

# ---------------- packed-weight slab layout ----------------
# One f32 slab, width 192 (= 3 gates x 2 directions x hidden).  Every piece
# starts on an 8-row boundary so in-kernel static slices stay tile-aligned.
H2_1 = 2 * RAW_HIDDEN_DIM          # 64: layer-1 bidirectional hidden width
H2_2 = 2 * RAW_HIDDEN_DIM_2        # 64: layer-2 bidirectional hidden width
GATE_W1 = 3 * H2_1                 # 192: [i_f|i_b | g_f|g_b | o_f|o_b]
GATE_W2 = 3 * H2_2                 # 192
SLAB_W = max(GATE_W1, GATE_W2)     # 192

R_L1W = 0                          # (16, 192)
R_L2W = 16                         # (64, 192)
R_L1B = 80                         # (1, 192)
R_L2B = 88                         # (1, 192)
R_RFC_W1 = 96                      # (64, 32)
R_RFC_W2 = 160                     # (32, 32)
R_FFC_W1 = 192                     # (16, 32)
R_FFC_W2 = 208                     # (32, 32)
R_PMP_W = 240                      # (16, 32)
R_BIASES = 256                     # (8, 32): rows +0..+4 = rfc_b1, rfc_b2,
                                   #          ffc_b1, ffc_b2, pmp_b
R_PDICT = 264                      # (8, 16): prompt_dict zero-padded from (6, 16)
SLAB_ROWS = 272


# ---------------- in-kernel helpers ----------------
def _l2norm(y):
    # rsqrt lowers to the EUP (its own VLIW slot); eps avoids NaN on zero rows.
    return y * jax.lax.rsqrt(jnp.sum(y * y, axis=-1, keepdims=True) + EPS)


def _bilstm_step(x, w, b):
    """Single-timestep bidirectional LSTM, zero initial (h, c), f gate elided.

    w: (in, 6*hid) packed as [i_f|i_b | g_f|g_b | o_f|o_b]
    b: (1, 6*hid) = b_ih + b_hh in the same packing.
    Returns (B, 2*hid) = [h_fwd | h_bwd].
    """
    gates = jnp.dot(x, w, preferred_element_type=jnp.float32) + b
    h2 = gates.shape[-1] // 3          # == 2*hid
    i_g = jax.nn.sigmoid(gates[:, 0:h2])
    g_g = jnp.tanh(gates[:, h2:2 * h2])
    o_g = jax.nn.sigmoid(gates[:, 2 * h2:3 * h2])
    return o_g * jnp.tanh(i_g * g_g)


def _mlp_l2norm(x, w1, b1, w2, b2):
    """Linear -> ReLU -> Linear -> ReLU -> row-wise L2 normalize."""
    h = jnp.maximum(jnp.dot(x, w1, preferred_element_type=jnp.float32) + b1, 0.0)
    y = jnp.maximum(jnp.dot(h, w2, preferred_element_type=jnp.float32) + b2, 0.0)
    return _l2norm(y)


def _ab_t(a, b):
    """a @ b.T with f32 accumulation."""
    return jax.lax.dot_general(
        a, b, dimension_numbers=(((1,), (1,)), ((), ())),
        preferred_element_type=jnp.float32)


# ---------------- fused forward kernel ----------------
def _fused_forward_kernel(scale_ref, raw_ref, feat_ref, prompt_ref, slab_ref,
                          out_ref, *, alpha, val):
    # --- unpack the single weight slab with static (tile-aligned) slices ---
    l1_w = slab_ref[R_L1W:R_L1W + RAW_INPUT_DIM, 0:GATE_W1]
    l1_b = slab_ref[R_L1B:R_L1B + 1, 0:GATE_W1]
    l2_w = slab_ref[R_L2W:R_L2W + H2_1, 0:GATE_W2]
    l2_b = slab_ref[R_L2B:R_L2B + 1, 0:GATE_W2]
    rfc_w1 = slab_ref[R_RFC_W1:R_RFC_W1 + H2_2, 0:RAW_LINEAR_DIM]
    rfc_w2 = slab_ref[R_RFC_W2:R_RFC_W2 + RAW_LINEAR_DIM, 0:OUTPUT_DIM]
    ffc_w1 = slab_ref[R_FFC_W1:R_FFC_W1 + FEAT_INPUT_DIM, 0:FEAT_LINEAR_DIM]
    ffc_w2 = slab_ref[R_FFC_W2:R_FFC_W2 + FEAT_LINEAR_DIM, 0:OUTPUT_DIM]
    pmp_w = slab_ref[R_PMP_W:R_PMP_W + PROMPT_DIM, 0:OUTPUT_DIM]
    # one aligned (8,32) load holds all five small biases (all width 32)
    bias_blk = slab_ref[R_BIASES:R_BIASES + 8, 0:OUTPUT_DIM]
    rfc_b1, rfc_b2 = bias_blk[0:1], bias_blk[1:2]
    ffc_b1, ffc_b2 = bias_blk[2:3], bias_blk[3:4]
    pmp_b = bias_blk[4:5]

    # raw branch: two single-step bidirectional LSTM layers, then MLP + L2 norm
    h1 = _bilstm_step(raw_ref[...], l1_w, l1_b)
    h2 = _bilstm_step(h1, l2_w, l2_b)
    raw_out = _mlp_l2norm(h2, rfc_w1, rfc_b1, rfc_w2, rfc_b2)

    # feature branch
    feat_out = _mlp_l2norm(feat_ref[...], ffc_w1, ffc_b1, ffc_w2, ffc_b2)

    combined = alpha * raw_out + (1.0 - alpha) * feat_out

    # prompt (and, in val mode, prompt_dict) projection in ONE pass
    pmp_in = prompt_ref[...]
    if val:
        pdict = slab_ref[R_PDICT:R_PDICT + 8, 0:PROMPT_DIM]   # zero-padded (8,16)
        pmp_in = jnp.concatenate([pmp_in, pdict], axis=0)
    pmp_feat = _l2norm(
        jnp.dot(pmp_in, pmp_w, preferred_element_type=jnp.float32) + pmp_b)
    # fold exp(logit_scale) into the prompt features once
    pmp_feat = pmp_feat * scale_ref[0]

    # fused logits: cols [0:P] = logits_per_x; (val) [P:P+6] = logits_per_pred
    out_ref[...] = _ab_t(combined, pmp_feat)


# ---------------- wrapper ----------------
def bilstm_model_forward(params, raw_input, feat_input, prompt, val=False):
    # PyTorch forward does raw_input.unsqueeze(1): seq_len == 1 and zero
    # initial (h, c) — exactly what the fused single-step LSTM assumes.
    assert raw_input.ndim == 2 and feat_input.ndim == 2 and prompt.ndim == 2
    B = raw_input.shape[0]
    P = prompt.shape[0]
    if val:
        # in-kernel concat with the 8-row padded prompt_dict block assumes
        # the prompt rows are sublane-aligned
        assert P % 8 == 0

    vmem = pl.BlockSpec(memory_space=pltpu.MemorySpace.VMEM)
    smem = pl.BlockSpec(memory_space=pltpu.MemorySpace.SMEM)
    out_cols = P + 8 if val else P          # val: [lx | lpred(6) | 2 pad cols]

    kernel = functools.partial(_fused_forward_kernel, alpha=float(ALPHA), val=val)
    logits = pl.pallas_call(
        kernel,
        in_specs=[smem, vmem, vmem, vmem, vmem],
        out_specs=vmem,
        out_shape=jax.ShapeDtypeStruct((B, out_cols), jnp.float32),
    )(params["logit_scale_exp"], raw_input, feat_input, prompt, params["slab"])

    logits_per_x = logits[:, :P] if val else logits
    logits_per_pmp = logits_per_x.T         # bit-exact, matches PyTorch .t()
    if val:
        logits_per_pred = logits[:, P:P + N_PROMPT_DICT]
        return logits_per_x, logits_per_pmp, logits_per_pred
    return logits_per_x, logits_per_pmp


# ---------------- parameters ----------------
def init_params(key):
    ks = iter(jax.random.split(key, 64))

    def u(shape, fan):
        s = 1.0 / np.sqrt(fan)
        return np.asarray(jax.random.uniform(next(ks), shape, jnp.float32, -s, s))

    def pack_bilstm(in_dim, hid):
        """Packed single-step bidirectional LSTM weights, forget gate dropped.

        Columns: [i_f|i_b | g_f|g_b | o_f|o_b] (PyTorch gate order i, f, g, o
        with the dead f block removed since c0 == 0); bias = b_ih + b_hh.
        """
        w_cols, b_cols = [], []
        for _gate in range(3):               # i, g, o
            for _direction in range(2):      # forward, backward
                w_cols.append(u((in_dim, hid), hid))
                b_cols.append(u((1, hid), hid) + u((1, hid), hid))
        return np.concatenate(w_cols, 1), np.concatenate(b_cols, 1)

    p = {}
    p["l1_w"], p["l1_b"] = pack_bilstm(RAW_INPUT_DIM, RAW_HIDDEN_DIM)
    p["l2_w"], p["l2_b"] = pack_bilstm(H2_1, RAW_HIDDEN_DIM_2)
    p["rfc_w1"] = u((H2_2, RAW_LINEAR_DIM), H2_2)
    p["rfc_b1"] = u((1, RAW_LINEAR_DIM), H2_2)
    p["rfc_w2"] = u((RAW_LINEAR_DIM, OUTPUT_DIM), RAW_LINEAR_DIM)
    p["rfc_b2"] = u((1, OUTPUT_DIM), RAW_LINEAR_DIM)
    p["ffc_w1"] = u((FEAT_INPUT_DIM, FEAT_LINEAR_DIM), FEAT_INPUT_DIM)
    p["ffc_b1"] = u((1, FEAT_LINEAR_DIM), FEAT_INPUT_DIM)
    p["ffc_w2"] = u((FEAT_LINEAR_DIM, OUTPUT_DIM), FEAT_LINEAR_DIM)
    p["ffc_b2"] = u((1, OUTPUT_DIM), FEAT_LINEAR_DIM)
    p["pmp_w"] = u((PROMPT_DIM, OUTPUT_DIM), PROMPT_DIM)
    p["pmp_b"] = u((1, OUTPUT_DIM), PROMPT_DIM)
    # logit_scale = log(1/0.07); exp precomputed; shape (1,) => no 2-D SMEM pad
    p["logit_scale"] = jnp.full((1,), np.log(1.0 / 0.07), jnp.float32)
    p["logit_scale_exp"] = jnp.exp(p["logit_scale"])
    p["prompt_dict"] = np.asarray(
        jax.random.normal(next(ks), (N_PROMPT_DICT, PROMPT_DIM), jnp.float32))

    # ---- single tile-aligned weight slab => ONE HBM->VMEM DMA ----
    slab = np.zeros((SLAB_ROWS, SLAB_W), np.float32)

    def put(r0, arr):
        slab[r0:r0 + arr.shape[0], 0:arr.shape[1]] = arr

    put(R_L1W, p["l1_w"]);   put(R_L1B, p["l1_b"])
    put(R_L2W, p["l2_w"]);   put(R_L2B, p["l2_b"])
    put(R_RFC_W1, p["rfc_w1"]); put(R_RFC_W2, p["rfc_w2"])
    put(R_FFC_W1, p["ffc_w1"]); put(R_FFC_W2, p["ffc_w2"])
    put(R_PMP_W, p["pmp_w"])
    put(R_BIASES + 0, p["rfc_b1"]); put(R_BIASES + 1, p["rfc_b2"])
    put(R_BIASES + 2, p["ffc_b1"]); put(R_BIASES + 3, p["ffc_b2"])
    put(R_BIASES + 4, p["pmp_b"])
    put(R_PDICT, p["prompt_dict"])           # last 2 rows stay zero padding
    # NOTE: on v6e/v7x the slab could be stored in bf16 (half the weight DMA
    # bytes, keep f32 accumulation); kept f32 here so the 1e-3 check against
    # the f32 reference holds unconditionally (and v5e has no bf16 VPU path).
    p["slab"] = jnp.asarray(slab)

    # jnp copies of the unpacked pieces for the pure-JAX reference
    for k in ("l1_w", "l1_b", "l2_w", "l2_b", "rfc_w1", "rfc_b1", "rfc_w2",
              "rfc_b2", "ffc_w1", "ffc_b1", "ffc_w2", "ffc_b2", "pmp_w",
              "pmp_b", "prompt_dict"):
        p[k] = jnp.asarray(p[k])
    return p


# ---------------- pure-JAX reference (same packed weights) ----------------
def reference_forward(params, raw_input, feat_input, prompt, val=False):
    def lstm(x, w, b):
        g = x @ w + b
        h2 = g.shape[-1] // 3
        return (jax.nn.sigmoid(g[:, 2 * h2:]) *
                jnp.tanh(jax.nn.sigmoid(g[:, :h2]) * jnp.tanh(g[:, h2:2 * h2])))

    def mlp(x, w1, b1, w2, b2):
        h = jnp.maximum(x @ w1 + b1, 0.0)
        y = jnp.maximum(h @ w2 + b2, 0.0)
        return y / jnp.sqrt(jnp.sum(y * y, -1, keepdims=True) + EPS)

    h1 = lstm(raw_input, params["l1_w"], params["l1_b"])
    h2 = lstm(h1, params["l2_w"], params["l2_b"])
    raw_out = mlp(h2, params["rfc_w1"], params["rfc_b1"],
                  params["rfc_w2"], params["rfc_b2"])
    feat_out = mlp(feat_input, params["ffc_w1"], params["ffc_b1"],
                   params["ffc_w2"], params["ffc_b2"])
    combined = ALPHA * raw_out + (1.0 - ALPHA) * feat_out
    pmp = prompt @ params["pmp_w"] + params["pmp_b"]
    pmp = pmp / jnp.sqrt(jnp.sum(pmp * pmp, -1, keepdims=True) + EPS)
    scale = params["logit_scale_exp"][0]
    lx = scale * combined @ pmp.T
    lp = lx.T
    if val:
        pred = params["prompt_dict"] @ params["pmp_w"] + params["pmp_b"]
        pred = pred / jnp.sqrt(jnp.sum(pred * pred, -1, keepdims=True) + EPS)
        return lx, lp, scale * combined @ pred.T
    return lx, lp


if __name__ == "__main__":
    key = jax.random.PRNGKey(0)
    k_params, k_raw, k_feat, k_prompt = jax.random.split(key, 4)
    params = init_params(k_params)

    B = 8
    P = 8
    raw_input = jax.random.normal(k_raw, (B, RAW_INPUT_DIM), jnp.float32)
    feat_input = jax.random.normal(k_feat, (B, FEAT_INPUT_DIM), jnp.float32)
    prompt = jax.random.normal(k_prompt, (P, PROMPT_DIM), jnp.float32)

    # train path
    logits_per_x, logits_per_pmp = bilstm_model_forward(
        params, raw_input, feat_input, prompt, val=False)
    jax.block_until_ready((logits_per_x, logits_per_pmp))
    assert logits_per_x.shape == (B, P)
    assert logits_per_pmp.shape == (P, B)
    assert bool(jnp.all(jnp.isfinite(logits_per_x)))
    assert bool(jnp.array_equal(logits_per_pmp, logits_per_x.T))   # bit-exact

    ref_x, ref_p = reference_forward(params, raw_input, feat_input, prompt)
    assert bool(jnp.allclose(logits_per_x, ref_x, rtol=1e-3, atol=1e-3))
    assert bool(jnp.allclose(logits_per_pmp, ref_p, rtol=1e-3, atol=1e-3))

    # val path
    lx_v, lp_v, lpred_v = bilstm_model_forward(
        params, raw_input, feat_input, prompt, val=True)
    jax.block_until_ready((lx_v, lp_v, lpred_v))
    assert lx_v.shape == (B, P) and lpred_v.shape == (B, N_PROMPT_DICT)
    ref_xv, ref_pv, ref_predv = reference_forward(
        params, raw_input, feat_input, prompt, val=True)
    assert bool(jnp.allclose(lx_v, ref_xv, rtol=1e-3, atol=1e-3))
    assert bool(jnp.allclose(lp_v, ref_pv, rtol=1e-3, atol=1e-3))
    assert bool(jnp.allclose(lpred_v, ref_predv, rtol=1e-3, atol=1e-3))

    print("KERNEL_OK")
</pallas_src>

<mosaic_0001>
module attributes {stable_mosaic.version = 11 : i64} {
  func.func @_fused_forward_kernel(%arg0: memref<1xf32, #tpu.memory_space<smem>>, %arg1: memref<8x16xf32, #tpu.memory_space<vmem>>, %arg2: memref<8x16xf32, #tpu.memory_space<vmem>>, %arg3: memref<8x16xf32, #tpu.memory_space<vmem>>, %arg4: memref<272x192xf32, #tpu.memory_space<vmem>>, %arg5: memref<8x8xf32, #tpu.memory_space<vmem>>) attributes {dimension_semantics = [], scalar_prefetch = 0 : i64, scratch_operands = 0 : i64, tpu.core_type = #tpu.core_type<tc>} {
    %c0 = arith.constant 0 : index
    %c0_0 = arith.constant 0 : index
    %0 = vector.load %arg4[%c0, %c0_0] : memref<272x192xf32, #tpu.memory_space<vmem>>, vector<16x192xf32>
    %c80 = arith.constant 80 : index
    %c0_1 = arith.constant 0 : index
    %1 = vector.load %arg4[%c80, %c0_1] : memref<272x192xf32, #tpu.memory_space<vmem>>, vector<1x192xf32>
    %c16 = arith.constant 16 : index
    %c0_2 = arith.constant 0 : index
    %2 = vector.load %arg4[%c16, %c0_2] : memref<272x192xf32, #tpu.memory_space<vmem>>, vector<64x192xf32>
    %c88 = arith.constant 88 : index
    %c0_3 = arith.constant 0 : index
    %3 = vector.load %arg4[%c88, %c0_3] : memref<272x192xf32, #tpu.memory_space<vmem>>, vector<1x192xf32>
    %c96 = arith.constant 96 : index
    %c0_4 = arith.constant 0 : index
    %4 = vector.load %arg4[%c96, %c0_4] : memref<272x192xf32, #tpu.memory_space<vmem>>, vector<64x32xf32>
    %c160 = arith.constant 160 : index
    %c0_5 = arith.constant 0 : index
    %5 = vector.load %arg4[%c160, %c0_5] : memref<272x192xf32, #tpu.memory_space<vmem>>, vector<32x32xf32>
    %c192 = arith.constant 192 : index
    %c0_6 = arith.constant 0 : index
    %6 = vector.load %arg4[%c192, %c0_6] : memref<272x192xf32, #tpu.memory_space<vmem>>, vector<16x32xf32>
    %c208 = arith.constant 208 : index
    %c0_7 = arith.constant 0 : index
    %7 = vector.load %arg4[%c208, %c0_7] : memref<272x192xf32, #tpu.memory_space<vmem>>, vector<32x32xf32>
    %c240 = arith.constant 240 : index
    %c0_8 = arith.constant 0 : index
    %8 = vector.load %arg4[%c240, %c0_8] : memref<272x192xf32, #tpu.memory_space<vmem>>, vector<16x32xf32>
    %c256 = arith.constant 256 : index
    %c0_9 = arith.constant 0 : index
    %9 = vector.load %arg4[%c256, %c0_9] : memref<272x192xf32, #tpu.memory_space<vmem>>, vector<8x32xf32>
    %10 = vector.extract_strided_slice %9 {offsets = [0, 0], sizes = [1, 32], strides = [1, 1]} : vector<8x32xf32> to vector<1x32xf32>
    %11 = vector.extract_strided_slice %9 {offsets = [1, 0], sizes = [1, 32], strides = [1, 1]} : vector<8x32xf32> to vector<1x32xf32>
    %12 = vector.extract_strided_slice %9 {offsets = [2, 0], sizes = [1, 32], strides = [1, 1]} : vector<8x32xf32> to vector<1x32xf32>
    %13 = vector.extract_strided_slice %9 {offsets = [3, 0], sizes = [1, 32], strides = [1, 1]} : vector<8x32xf32> to vector<1x32xf32>
    %14 = vector.extract_strided_slice %9 {offsets = [4, 0], sizes = [1, 32], strides = [1, 1]} : vector<8x32xf32> to vector<1x32xf32>
    %c0_10 = arith.constant 0 : index
    %c0_11 = arith.constant 0 : index
    %15 = vector.load %arg1[%c0_10, %c0_11] : memref<8x16xf32, #tpu.memory_space<vmem>>, vector<8x16xf32>
    %cst = arith.constant dense<0.000000e+00> : vector<8x192xf32>
    %16 = tpu.matmul %15, %0, %cst {dimension_numbers = #tpu.dot_dimension_numbers<[1], [0], [0], [1], [0, 0, 1, 1], [], []>} : vector<8x16xf32>, vector<16x192xf32>, vector<8x192xf32> -> vector<8x192xf32>
    %17 = vector.broadcast %1 : vector<1x192xf32> to vector<8x192xf32>
    %18 = arith.addf %16, %17 : vector<8x192xf32>
    %19 = vector.extract_strided_slice %18 {offsets = [0, 0], sizes = [8, 64], strides = [1, 1]} : vector<8x192xf32> to vector<8x64xf32>
    %20 = arith.negf %19 : vector<8x64xf32>
    %21 = math.exp %20 : vector<8x64xf32>
    %cst_12 = arith.constant 1.000000e+00 : f32
    %22 = vector.broadcast %cst_12 : f32 to vector<8x64xf32>
    %23 = arith.addf %22, %21 : vector<8x64xf32>
    %24 = arith.divf %22, %23 : vector<8x64xf32>
    %25 = vector.extract_strided_slice %18 {offsets = [0, 64], sizes = [8, 64], strides = [1, 1]} : vector<8x192xf32> to vector<8x64xf32>
    %26 = math.tanh %25 : vector<8x64xf32>
    %27 = vector.extract_strided_slice %18 {offsets = [0, 128], sizes = [8, 64], strides = [1, 1]} : vector<8x192xf32> to vector<8x64xf32>
    %28 = arith.negf %27 : vector<8x64xf32>
    %29 = math.exp %28 : vector<8x64xf32>
    %cst_13 = arith.constant 1.000000e+00 : f32
    %30 = vector.broadcast %cst_13 : f32 to vector<8x64xf32>
    %31 = arith.addf %30, %29 : vector<8x64xf32>
    %32 = arith.divf %30, %31 : vector<8x64xf32>
    %33 = arith.mulf %24, %26 : vector<8x64xf32>
    %34 = math.tanh %33 : vector<8x64xf32>
    %35 = arith.mulf %32, %34 : vector<8x64xf32>
    %cst_14 = arith.constant dense<0.000000e+00> : vector<8x192xf32>
    %36 = tpu.matmul %35, %2, %cst_14 {dimension_numbers = #tpu.dot_dimension_numbers<[1], [0], [0], [1], [0, 0, 1, 1], [], []>} : vector<8x64xf32>, vector<64x192xf32>, vector<8x192xf32> -> vector<8x192xf32>
    %37 = vector.broadcast %3 : vector<1x192xf32> to vector<8x192xf32>
    %38 = arith.addf %36, %37 : vector<8x192xf32>
    %39 = vector.extract_strided_slice %38 {offsets = [0, 0], sizes = [8, 64], strides = [1, 1]} : vector<8x192xf32> to vector<8x64xf32>
    %40 = arith.negf %39 : vector<8x64xf32>
    %41 = math.exp %40 : vector<8x64xf32>
    %cst_15 = arith.constant 1.000000e+00 : f32
    %42 = vector.broadcast %cst_15 : f32 to vector<8x64xf32>
    %43 = arith.addf %42, %41 : vector<8x64xf32>
    %44 = arith.divf %42, %43 : vector<8x64xf32>
    %45 = vector.extract_strided_slice %38 {offsets = [0, 64], sizes = [8, 64], strides = [1, 1]} : vector<8x192xf32> to vector<8x64xf32>
    %46 = math.tanh %45 : vector<8x64xf32>
    %47 = vector.extract_strided_slice %38 {offsets = [0, 128], sizes = [8, 64], strides = [1, 1]} : vector<8x192xf32> to vector<8x64xf32>
    %48 = arith.negf %47 : vector<8x64xf32>
    %49 = math.exp %48 : vector<8x64xf32>
    %cst_16 = arith.constant 1.000000e+00 : f32
    %50 = vector.broadcast %cst_16 : f32 to vector<8x64xf32>
    %51 = arith.addf %50, %49 : vector<8x64xf32>
    %52 = arith.divf %50, %51 : vector<8x64xf32>
    %53 = arith.mulf %44, %46 : vector<8x64xf32>
    %54 = math.tanh %53 : vector<8x64xf32>
    %55 = arith.mulf %52, %54 : vector<8x64xf32>
    %cst_17 = arith.constant dense<0.000000e+00> : vector<8x32xf32>
    %56 = tpu.matmul %55, %4, %cst_17 {dimension_numbers = #tpu.dot_dimension_numbers<[1], [0], [0], [1], [0, 0, 1, 1], [], []>} : vector<8x64xf32>, vector<64x32xf32>, vector<8x32xf32> -> vector<8x32xf32>
    %57 = vector.broadcast %10 : vector<1x32xf32> to vector<8x32xf32>
    %58 = arith.addf %56, %57 : vector<8x32xf32>
    %cst_18 = arith.constant 0.000000e+00 : f32
    %59 = vector.broadcast %cst_18 : f32 to vector<8x32xf32>
    %60 = arith.maximumf %58, %59 : vector<8x32xf32>
    %cst_19 = arith.constant dense<0.000000e+00> : vector<8x32xf32>
    %61 = tpu.matmul %60, %5, %cst_19 {dimension_numbers = #tpu.dot_dimension_numbers<[1], [0], [0], [1], [0, 0, 1, 1], [], []>} : vector<8x32xf32>, vector<32x32xf32>, vector<8x32xf32> -> vector<8x32xf32>
    %62 = vector.broadcast %11 : vector<1x32xf32> to vector<8x32xf32>
    %63 = arith.addf %61, %62 : vector<8x32xf32>
    %cst_20 = arith.constant 0.000000e+00 : f32
    %64 = vector.broadcast %cst_20 : f32 to vector<8x32xf32>
    %65 = arith.maximumf %63, %64 : vector<8x32xf32>
    %66 = arith.mulf %65, %65 : vector<8x32xf32>
    %cst_21 = arith.constant dense<0.000000e+00> : vector<8xf32>
    %67 = vector.multi_reduction <add>, %66, %cst_21 [1] : vector<8x32xf32> to vector<8xf32>
    %68 = vector.shape_cast %67 : vector<8xf32> to vector<8x1xf32>
    %cst_22 = arith.constant 9.99999996E-13 : f32
    %69 = vector.broadcast %cst_22 : f32 to vector<8x1xf32>
    %70 = arith.addf %68, %69 : vector<8x1xf32>
    %71 = math.rsqrt %70 : vector<8x1xf32>
    %72 = vector.broadcast %71 : vector<8x1xf32> to vector<8x32xf32>
    %73 = arith.mulf %65, %72 : vector<8x32xf32>
    %c0_23 = arith.constant 0 : index
    %c0_24 = arith.constant 0 : index
    %74 = vector.load %arg2[%c0_23, %c0_24] : memref<8x16xf32, #tpu.memory_space<vmem>>, vector<8x16xf32>
    %cst_25 = arith.constant dense<0.000000e+00> : vector<8x32xf32>
    %75 = tpu.matmul %74, %6, %cst_25 {dimension_numbers = #tpu.dot_dimension_numbers<[1], [0], [0], [1], [0, 0, 1, 1], [], []>} : vector<8x16xf32>, vector<16x32xf32>, vector<8x32xf32> -> vector<8x32xf32>
    %76 = vector.broadcast %12 : vector<1x32xf32> to vector<8x32xf32>
    %77 = arith.addf %75, %76 : vector<8x32xf32>
    %cst_26 = arith.constant 0.000000e+00 : f32
    %78 = vector.broadcast %cst_26 : f32 to vector<8x32xf32>
    %79 = arith.maximumf %77, %78 : vector<8x32xf32>
    %cst_27 = arith.constant dense<0.000000e+00> : vector<8x32xf32>
    %80 = tpu.matmul %79, %7, %cst_27 {dimension_numbers = #tpu.dot_dimension_numbers<[1], [0], [0], [1], [0, 0, 1, 1], [], []>} : vector<8x32xf32>, vector<32x32xf32>, vector<8x32xf32> -> vector<8x32xf32>
    %81 = vector.broadcast %13 : vector<1x32xf32> to vector<8x32xf32>
    %82 = arith.addf %80, %81 : vector<8x32xf32>
    %cst_28 = arith.constant 0.000000e+00 : f32
    %83 = vector.broadcast %cst_28 : f32 to vector<8x32xf32>
    %84 = arith.maximumf %82, %83 : vector<8x32xf32>
    %85 = arith.mulf %84, %84 : vector<8x32xf32>
    %cst_29 = arith.constant dense<0.000000e+00> : vector<8xf32>
    %86 = vector.multi_reduction <add>, %85, %cst_29 [1] : vector<8x32xf32> to vector<8xf32>
    %87 = vector.shape_cast %86 : vector<8xf32> to vector<8x1xf32>
    %cst_30 = arith.constant 9.99999996E-13 : f32
    %88 = vector.broadcast %cst_30 : f32 to vector<8x1xf32>
    %89 = arith.addf %87, %88 : vector<8x1xf32>
    %90 = math.rsqrt %89 : vector<8x1xf32>
    %91 = vector.broadcast %90 : vector<8x1xf32> to vector<8x32xf32>
    %92 = arith.mulf %84, %91 : vector<8x32xf32>
    %cst_31 = arith.constant 5.000000e-01 : f32
    %93 = vector.broadcast %cst_31 : f32 to vector<8x32xf32>
    %94 = arith.mulf %93, %73 : vector<8x32xf32>
    %cst_32 = arith.constant 5.000000e-01 : f32
    %95 = vector.broadcast %cst_32 : f32 to vector<8x32xf32>
    %96 = arith.mulf %95, %92 : vector<8x32xf32>
    %97 = arith.addf %94, %96 : vector<8x32xf32>
    %c0_33 = arith.constant 0 : index
    %c0_34 = arith.constant 0 : index
    %98 = vector.load %arg3[%c0_33, %c0_34] : memref<8x16xf32, #tpu.memory_space<vmem>>, vector<8x16xf32>
    %cst_35 = arith.constant dense<0.000000e+00> : vector<8x32xf32>
    %99 = tpu.matmul %98, %8, %cst_35 {dimension_numbers = #tpu.dot_dimension_numbers<[1], [0], [0], [1], [0, 0, 1, 1], [], []>} : vector<8x16xf32>, vector<16x32xf32>, vector<8x32xf32> -> vector<8x32xf32>
    %100 = vector.broadcast %14 : vector<1x32xf32> to vector<8x32xf32>
    %101 = arith.addf %99, %100 : vector<8x32xf32>
    %102 = arith.mulf %101, %101 : vector<8x32xf32>
    %cst_36 = arith.constant dense<0.000000e+00> : vector<8xf32>
    %103 = vector.multi_reduction <add>, %102, %cst_36 [1] : vector<8x32xf32> to vector<8xf32>
    %104 = vector.shape_cast %103 : vector<8xf32> to vector<8x1xf32>
    %cst_37 = arith.constant 9.99999996E-13 : f32
    %105 = vector.broadcast %cst_37 : f32 to vector<8x1xf32>
    %106 = arith.addf %104, %105 : vector<8x1xf32>
    %107 = math.rsqrt %106 : vector<8x1xf32>
    %108 = vector.broadcast %107 : vector<8x1xf32> to vector<8x32xf32>
    %109 = arith.mulf %101, %108 : vector<8x32xf32>
    %c0_38 = arith.constant 0 : index
    %110 = memref.load %arg0[%c0_38] : memref<1xf32, #tpu.memory_space<smem>>
    %111 = vector.broadcast %110 : f32 to vector<8x32xf32>
    %112 = arith.mulf %109, %111 : vector<8x32xf32>
    %cst_39 = arith.constant dense<0.000000e+00> : vector<8x8xf32>
    %113 = tpu.matmul %97, %112, %cst_39 {dimension_numbers = #tpu.dot_dimension_numbers<[1], [1], [0], [0], [0, 0, 1, 0], [], []>} : vector<8x32xf32>, vector<8x32xf32>, vector<8x8xf32> -> vector<8x8xf32>
    %c0_40 = arith.constant 0 : index
    %c0_41 = arith.constant 0 : index
    %114 = vector.load %arg5[%c0_40, %c0_41] : memref<8x8xf32, #tpu.memory_space<vmem>>, vector<8x8xf32>
    tpu.vector_store %arg5[%c0_40, %c0_41], %113 {strides = array<i32>} : memref<8x8xf32, #tpu.memory_space<vmem>>, vector<8x8xf32>,
    return
  }
}

</mosaic_0001>

<llo_original>
// kernel: tpu_custom_call.1
$region0: #{tpu_custom_call.1}
  #allocation0 [shape = 'u32[]', space=smem, size = 0x4, offset = 0x4, fixed_abs, tag = 'smem constant byte address 0x4 - core index']
  #allocation1 [shape = 'u32[144,128]{1,0:T(1,128)}', space=vmem, size = 0x12000, scoped, tag = 'internal scratch']
  #allocation2 [shape = 'f32[1]{0:T(128)S(6)}', space=smem, size = 0x200, scoped, tag = 'scoped memory for tpu_custom_call.1']
  %s0 = inlined_call_operand.<no memory space> [shape: f32[1], index: 0, kind: input, shape index: {}]
  %s1 = inlined_call_operand.hbm [shape: f32[8,16], index: 1, kind: input, shape index: {}]
  %s2 = inlined_call_operand.hbm [shape: f32[8,16], index: 2, kind: input, shape index: {}]
  %s3 = inlined_call_operand.vmem [shape: f32[8,16], index: 3, kind: input, shape index: {}]
  %s4 = inlined_call_operand.hbm [shape: f32[272,192], index: 4, kind: input, shape index: {}]
  %s5 = inlined_call_operand.hbm [shape: f32[8,8], index: 5, kind: output, shape index: {}]
  %s6 = sld [smem:[#allocation0]]
  $region42: #{tpu_custom_call.1} parent=0
    _
  %s8 = ssub.s32 1, %s6
  %s9 = scalar_select 0, %s8, %s6
  %10 = sst [smem:[#allocation2]] %s0
  $region1: #{tpu_custom_call.1} parent=0
    #allocation3 [shape = 'u8[4096]{0}', space=vmem, size = 0x1000, scoped, tag = 'input window, operand 1, single buffered']
    #allocation4 [shape = 's32[1]{0}', space=sflag, size = 0x4, scoped, tag = 'scoped memory for tpu_custom_call.1']
    #allocation5 [shape = 's32[1]{0}', space=sflag, size = 0x4, scoped, tag = 'scoped memory for tpu_custom_call.1']
    #allocation6 [shape = 'u8[4096]{0}', space=vmem, size = 0x1000, scoped, tag = 'input window, operand 2, single buffered']
    #allocation7 [shape = 's32[1]{0}', space=sflag, size = 0x4, scoped, tag = 'scoped memory for tpu_custom_call.1']
    #allocation8 [shape = 'u8[278528]{0}', space=vmem, size = 0x44000, scoped, tag = 'input window, operand 4, single buffered']
    #allocation9 [shape = 'u8[4096]{0}', space=vmem, size = 0x1000, scoped, tag = 'output window, operand 0, single buffered']
    %11 = vsyncpa [#allocation4], 0
    %12 = vsyncpa [#allocation7], 0
    %13 = vsyncpa [#allocation5], 0
    // Predicated region
    $region2: #{tpu_custom_call.1} parent=1 // pred_check
      _
    $region3: #{tpu_custom_call.1} parent=1 // pred_check_branch
      %15 = sbr.rel (0) target = $region5
    $region4: #{tpu_custom_call.1} parent=1 // pred_region
      _
    $region5: #{tpu_custom_call.1} parent=1 // pred_fallthru
      _
    // Predicated region
    $region6: #{tpu_custom_call.1} parent=1 // pred_check
      _
    $region7: #{tpu_custom_call.1} parent=1 // pred_check_branch
      %17 = sbr.rel (0) target = $region9
    $region8: #{tpu_custom_call.1} parent=1 // pred_region
      %s19 = ssub.s32 128, 128
      %20 = vsyncadd [#allocation4], %s19
      %s22 = sshll.u32 [#allocation3], 4
      %s23 = int_to_ptr.vmem [resolvable:$true] %s22
      %25 = dma.hbm_to_vmem [thread:$0]  %s1, 128, %s23, [#allocation4]
    $region9: #{tpu_custom_call.1} parent=1 // pred_fallthru
      _
    // Predicated region
    $region10: #{tpu_custom_call.1} parent=1 // pred_check
      _
    $region11: #{tpu_custom_call.1} parent=1 // pred_check_branch
      %27 = sbr.rel (0) target = $region13
    $region12: #{tpu_custom_call.1} parent=1 // pred_region
      %s29 = ssub.s32 128, 128
      %30 = vsyncadd [#allocation7], %s29
      %s32 = sshll.u32 [#allocation6], 4
      %s33 = int_to_ptr.vmem [resolvable:$true] %s32
      %35 = dma.hbm_to_vmem [thread:$0]  %s2, 128, %s33, [#allocation7]
    $region13: #{tpu_custom_call.1} parent=1 // pred_fallthru
      _
    // Predicated region
    $region14: #{tpu_custom_call.1} parent=1 // pred_check
      _
    $region15: #{tpu_custom_call.1} parent=1 // pred_check_branch
      %37 = sbr.rel (0) target = $region17
    $region16: #{tpu_custom_call.1} parent=1 // pred_region
      _
    $region17: #{tpu_custom_call.1} parent=1 // pred_fallthru
      _
    // Predicated region
    $region18: #{tpu_custom_call.1} parent=1 // pred_check
      _
    $region19: #{tpu_custom_call.1} parent=1 // pred_check_branch
      %39 = sbr.rel (0) target = $region21
    $region20: #{tpu_custom_call.1} parent=1 // pred_region
      %s41 = ssub.s32 8704, 8704
      %42 = vsyncadd [#allocation7], %s41
      %s43 = sshll.u32 [#allocation8], 4
      %s44 = int_to_ptr.vmem [resolvable:$true] %s43
      %49 = dma.hbm_to_vmem [thread:$0]  %s4, 8704, %s44, [#allocation7], 256, 256, 16
    $region21: #{tpu_custom_call.1} parent=1 // pred_fallthru
      _
    // Predicated region
    $region22: #{tpu_custom_call.1} parent=1 // pred_check
      _
    $region23: #{tpu_custom_call.1} parent=1 // pred_check_branch
      %51 = sbr.rel (0) target = $region25
    $region24: #{tpu_custom_call.1} parent=1 // pred_region
      %52 = dma.done [#allocation4], 128
    $region25: #{tpu_custom_call.1} parent=1 // pred_fallthru
      _
    // Predicated region
    $region26: #{tpu_custom_call.1} parent=1 // pred_check
      _
    $region27: #{tpu_custom_call.1} parent=1 // pred_check_branch
      %54 = sbr.rel (0) target = $region29
    $region28: #{tpu_custom_call.1} parent=1 // pred_region
      %55 = dma.done [#allocation7], 128
    $region29: #{tpu_custom_call.1} parent=1 // pred_fallthru
      _
    // Predicated region
    $region30: #{tpu_custom_call.1} parent=1 // pred_check
      _
    $region31: #{tpu_custom_call.1} parent=1 // pred_check_branch
      %57 = sbr.rel (0) target = $region33
    $region32: #{tpu_custom_call.1} parent=1 // pred_region
      %58 = dma.done [#allocation7], 8704
    $region33: #{tpu_custom_call.1} parent=1 // pred_fallthru
      _
    %v59 = vld [vmem:[#allocation8] sm:$0xff]
    %v60 = vld [vmem:[#allocation8 + $0x8] sm:$0xff]
    %v61 = vld [vmem:[#allocation8 + $0x10] sm:$0xff]
    %v62 = vld [vmem:[#allocation8 + $0x18] sm:$0xff]
    %s63 = scalar_lea.vmem [#allocation8], 160
    %v64 = vld [vmem:[%s63] ss:$8 sm:$0x3]
    %v65 = vld [vmem:[#allocation8 + $0x20] sm:$0xff]
    %v66 = vld [vmem:[#allocation8 + $0x28] sm:$0xff]
    %v67 = vld [vmem:[#allocation8 + $0x30] sm:$0xff]
    %v68 = vld [vmem:[#allocation8 + $0x38] sm:$0xff]
    %v69 = vld [vmem:[#allocation8 + $0x40] sm:$0xff]
    %v70 = vld [vmem:[#allocation8 + $0x48] sm:$0xff]
    %v71 = vld [vmem:[#allocation8 + $0x50] sm:$0xff]
    %v72 = vld [vmem:[#allocation8 + $0x58] sm:$0xff]
    %v73 = vld [vmem:[#allocation8 + $0x60] sm:$0xff]
    %v74 = vld [vmem:[#allocation8 + $0x68] sm:$0xff]
    %v75 = vld [vmem:[#allocation8 + $0x70] sm:$0xff]
    %v76 = vld [vmem:[#allocation8 + $0x78] sm:$0xff]
    %v77 = vld [vmem:[#allocation8 + $0x80] sm:$0xff]
    %v78 = vld [vmem:[#allocation8 + $0x88] sm:$0xff]
    %v79 = vld [vmem:[#allocation8 + $0x90] sm:$0xff]
    %v80 = vld [vmem:[#allocation8 + $0x98] sm:$0xff]
    %s81 = scalar_lea.vmem [#allocation8], 176
    %v82 = vld [vmem:[%s81] ss:$8 sm:$0x3]
    %v83 = vld [vmem:[#allocation8 + $0xc0] sm:$0xff]
    %v84 = vld [vmem:[#allocation8 + $0xd0] sm:$0xff]
    %v85 = vld [vmem:[#allocation8 + $0xe0] sm:$0xff]
    %v86 = vld [vmem:[#allocation8 + $0xf0] sm:$0xff]
    %v87 = vld [vmem:[#allocation8 + $0x100] sm:$0xff]
    %v88 = vld [vmem:[#allocation8 + $0x110] sm:$0xff]
    %v89 = vld [vmem:[#allocation8 + $0x120] sm:$0xff]
    %v90 = vld [vmem:[#allocation8 + $0x130] sm:$0xff]
    %v91 = vld [vmem:[#allocation8 + $0x140] sm:$0xff]
    %v92 = vld [vmem:[#allocation8 + $0x150] sm:$0xff]
    %v93 = vld [vmem:[#allocation8 + $0x160] sm:$0xff]
    %v94 = vld [vmem:[#allocation8 + $0x170] sm:$0xff]
    %v95 = vld [vmem:[#allocation8 + $0x180] sm:$0xff]
    %v96 = vld [vmem:[#allocation8 + $0x190] sm:$0xff]
    %v97 = vld [vmem:[#allocation8 + $0x1a0] sm:$0xff]
    %v98 = vld [vmem:[#allocation8 + $0x1b0] sm:$0xff]
    %v99 = vld [vmem:[#allocation8 + $0x1c0] sm:$0xff]
    %v100 = vld [vmem:[#allocation8 + $0x1d0] sm:$0xff]
    %v101 = vld [vmem:[#allocation8 + $0x1e0] sm:$0xff]
    %v102 = vld [vmem:[#allocation8 + $0x1f0] sm:$0xff]
    %v103 = vld [vmem:[#allocation8 + $0x200] sm:$0xff]
    %v104 = vld [vmem:[#allocation3] sm:$0xff]
    %v106 = vlaneseq
    %v107 = vshrl.u32 %v106, 7
    %v108 = vsub.s32 0, %v107
    %v109 = vrot.slane %v64, %v108
    %v110 = vlaneseq
    %v111 = vshrl.u32 %v110, 7
    %v112 = vsub.s32 1, %v111
    %v113 = vrot.slane %v64, %v112
    %vm116 = vcmask 130048
    %v118 = vsel %vm116, %v104, 0
    %120 = vmatprep.subr.mxu0 %v60
    %121 = vmatpush1.msra.mxu0 %v59
    %122 = vmatprep.subr.mxu0 %v62
    %123 = vmatpush1.msra.mxu0 %v61
    %124 = vmatprep.subr.mxu0 0.0
    %125 = vmatpush1.msra.mxu0 0.0
    %126 = vmatprep.subr.mxu0 0.0
    %127 = vmatpush1.msra.mxu0 0.0
    %128 = vmatprep.subr.mxu0 0.0
    %129 = vmatpush1.msra.mxu0 0.0
    %130 = vmatprep.subr.mxu0 0.0
    %131 = vmatpush1.msra.mxu0 0.0
    %132 = vmatprep.subr.mxu0 0.0
    %133 = vmatpush1.msra.mxu0 0.0
    %134 = vmatprep.subr.mxu0 0.0
    %135 = vmatpush1.msra.mxu0 0.0
    %136 = vmatprep.subr.mxu0 0.0
    %137 = vmatpush1.msra.mxu0 0.0
    %138 = vmatprep.subr.mxu0 0.0
    %139 = vmatpush1.msra.mxu0 0.0
    %140 = vmatprep.subr.mxu0 0.0
    %141 = vmatpush1.msra.mxu0 0.0
    %142 = vmatprep.subr.mxu0 0.0
    %143 = vmatpush1.msra.mxu0 0.0
    %144 = vmatprep.subr.mxu0 0.0
    %145 = vmatpush1.msra.mxu0 0.0
    %146 = vmatprep.subr.mxu0 0.0
    %147 = vmatpush1.msra.mxu0 0.0
    %148 = vmatprep.subr.mxu0 0.0
    %149 = vmatpush1.msra.mxu0 0.0
    %150 = vmatprep.subr.mxu0 0.0
    %151 = vmatpush1.msra.mxu0 0.0
    %152 = vmatprep.subr.mxu0 0.0
    %153 = vmatpush1.msra.mxu0 0.0
    %154 = vmatprep.subr.mxu0 0.0
    %155 = vmatpush1.msra.mxu0 0.0
    %156 = vmatprep.subr.mxu0 0.0
    %157 = vmatpush1.msra.mxu0 0.0
    %158 = vmatprep.subr.mxu0 0.0
    %159 = vmatpush1.msra.mxu0 0.0
    %160 = vmatprep.subr.mxu0 0.0
    %161 = vmatpush1.msra.mxu0 0.0
    %162 = vmatprep.subr.mxu0 0.0
    %163 = vmatpush1.msra.mxu0 0.0
    %164 = vmatprep.subr.mxu0 0.0
    %165 = vmatpush1.msra.mxu0 0.0
    %166 = vmatprep.subr.mxu0 0.0
    %167 = vmatpush1.msra.mxu0 0.0
    %168 = vmatprep.subr.mxu0 0.0
    %169 = vmatpush1.msra.mxu0 0.0
    %170 = vmatprep.subr.mxu0 0.0
    %171 = vmatpush1.msra.mxu0 0.0
    %172 = vmatprep.subr.mxu0 0.0
    %173 = vmatpush1.msra.mxu0 0.0
    %174 = vmatprep.subr.mxu0 0.0
    %175 = vmatpush1.msra.mxu0 0.0
    %176 = vmatprep.subr.mxu0 0.0
    %177 = vmatpush1.msra.mxu0 0.0
    %178 = vmatprep.subr.mxu0 0.0
    %179 = vmatpush1.msra.mxu0 0.0
    %180 = vmatprep.subr.mxu0 0.0
    %181 = vmatpush1.msra.mxu0 0.0
    %182 = vmatprep.subr.mxu0 0.0
    %183 = vmatpush1.msra.mxu0 0.0
    %184 = vmatprep.mubr.f32.mxu0 0.0
    %185 = vmatmul.mubr.f32.gmra.mrb[0].mxu0 %v118
    %v186 = vpop.f32.mrb[0].mxu0
    %v187 = vadd.f32 %v109, %v186
    %v188 = vpop.f32.mrb[0].mxu0
    %v189 = vadd.f32 %v113, %v188
    %190 = vdwg.mxu0
    %v191 = vxor.u32 %v187, 2147483648
    %v192 = vmul.f32 %v191, 1.442695
    %v193 = vpow.pop %v192
    %v194 = vadd.f32 %v193, 1.0
    %v195 = vrcp.pop %v194
    %v196 = vmul.f32 1.0, %v195
    %v197 = vtanh.pop %v187
    %v198 = vxor.u32 %v189, 2147483648
    %v199 = vmul.f32 %v198, 1.442695
    %v200 = vpow.pop %v199
    %v201 = vadd.f32 %v200, 1.0
    %v202 = vrcp.pop %v201
    %v203 = vmul.f32 1.0, %v202
    %205 = vrot.lane.b32.xlu0 %v197, 64
    %v206 = vpop.permute.xlu0 %205
    %v208 = vmul.f32 %v196, %v206
    %v209 = vtanh.pop %v208
    %v210 = vmul.f32 %v203, %v209
    %v212 = vlaneseq
    %v213 = vshrl.u32 %v212, 7
    %v214 = vsub.s32 0, %v213
    %v215 = vrot.slane %v82, %v214
    %v216 = vlaneseq
    %v217 = vshrl.u32 %v216, 7
    %v218 = vsub.s32 1, %v217
    %v219 = vrot.slane %v82, %v218
    %vm222 = vcmask 523264
    %v224 = vsel %vm222, %v210, 0
    %226 = vmatprep.subr.mxu0 %v66
    %227 = vmatpush1.msra.mxu0 %v65
    %228 = vmatprep.subr.mxu0 %v68
    %229 = vmatpush1.msra.mxu0 %v67
    %230 = vmatprep.subr.mxu0 %v70
    %231 = vmatpush1.msra.mxu0 %v69
    %232 = vmatprep.subr.mxu0 %v72
    %233 = vmatpush1.msra.mxu0 %v71
    %234 = vmatprep.subr.mxu0 %v74
    %235 = vmatpush1.msra.mxu0 %v73
    %236 = vmatprep.subr.mxu0 %v76
    %237 = vmatpush1.msra.mxu0 %v75
    %238 = vmatprep.subr.mxu0 %v78
    %239 = vmatpush1.msra.mxu0 %v77
    %240 = vmatprep.subr.mxu0 %v80
    %241 = vmatpush1.msra.mxu0 %v79
    %242 = vmatprep.subr.mxu0 0.0
    %243 = vmatpush1.msra.mxu0 0.0
    %244 = vmatprep.subr.mxu0 0.0
    %245 = vmatpush1.msra.mxu0 0.0
    %246 = vmatprep.subr.mxu0 0.0
    %247 = vmatpush1.msra.mxu0 0.0
    %248 = vmatprep.subr.mxu0 0.0
    %249 = vmatpush1.msra.mxu0 0.0
    %250 = vmatprep.subr.mxu0 0.0
    %251 = vmatpush1.msra.mxu0 0.0
    %252 = vmatprep.subr.mxu0 0.0
    %253 = vmatpush1.msra.mxu0 0.0
    %254 = vmatprep.subr.mxu0 0.0
    %255 = vmatpush1.msra.mxu0 0.0
    %256 = vmatprep.subr.mxu0 0.0
    %257 = vmatpush1.msra.mxu0 0.0
    %258 = vmatprep.subr.mxu0 0.0
    %259 = vmatpush1.msra.mxu0 0.0
    %260 = vmatprep.subr.mxu0 0.0
    %261 = vmatpush1.msra.mxu0 0.0
    %262 = vmatprep.subr.mxu0 0.0
    %263 = vmatpush1.msra.mxu0 0.0
    %264 = vmatprep.subr.mxu0 0.0
    %265 = vmatpush1.msra.mxu0 0.0
    %266 = vmatprep.subr.mxu0 0.0
    %267 = vmatpush1.msra.mxu0 0.0
    %268 = vmatprep.subr.mxu0 0.0
    %269 = vmatpush1.msra.mxu0 0.0
    %270 = vmatprep.subr.mxu0 0.0
    %271 = vmatpush1.msra.mxu0 0.0
    %272 = vmatprep.subr.mxu0 0.0
    %273 = vmatpush1.msra.mxu0 0.0
    %274 = vmatprep.subr.mxu0 0.0
    %275 = vmatpush1.msra.mxu0 0.0
    %276 = vmatprep.subr.mxu0 0.0
    %277 = vmatpush1.msra.mxu0 0.0
    %278 = vmatprep.subr.mxu0 0.0
    %279 = vmatpush1.msra.mxu0 0.0
    %280 = vmatprep.subr.mxu0 0.0
    %281 = vmatpush1.msra.mxu0 0.0
    %282 = vmatprep.subr.mxu0 0.0
    %283 = vmatpush1.msra.mxu0 0.0
    %284 = vmatprep.subr.mxu0 0.0
    %285 = vmatpush1.msra.mxu0 0.0
    %286 = vmatprep.subr.mxu0 0.0
    %287 = vmatpush1.msra.mxu0 0.0
    %288 = vmatprep.subr.mxu0 0.0
    %289 = vmatpush1.msra.mxu0 0.0
    %290 = vmatprep.mubr.f32.mxu0 0.0
    %291 = vmatmul.mubr.f32.gmra.mrb[0].mxu0 %v224
    %v292 = vpop.f32.mrb[0].mxu0
    %v293 = vadd.f32 %v215, %v292
    %v294 = vpop.f32.mrb[0].mxu0
    %v295 = vadd.f32 %v219, %v294
    %296 = vdwg.mxu0
    %v297 = vxor.u32 %v293, 2147483648
    %v298 = vmul.f32 %v297, 1.442695
    %v299 = vpow.pop %v298
    %v300 = vadd.f32 %v299, 1.0
    %v301 = vrcp.pop %v300
    %v302 = vmul.f32 1.0, %v301
    %v303 = vtanh.pop %v293
    %v304 = vxor.u32 %v295, 2147483648
    %v305 = vmul.f32 %v304, 1.442695
    %v306 = vpow.pop %v305
    %v307 = vadd.f32 %v306, 1.0
    %v308 = vrcp.pop %v307
    %v309 = vmul.f32 1.0, %v308
    %311 = vrot.lane.b32.xlu0 %v303, 64
    %v312 = vpop.permute.xlu0 %311
    %v314 = vmul.f32 %v302, %v312
    %v315 = vtanh.pop %v314
    %v316 = vmul.f32 %v309, %v315
    %v317 = vlaneseq
    %v318 = vshrl.u32 %v317, 7
    %v319 = vsub.s32 0, %v318
    %v320 = vrot.slane %v103, %v319
    %v322 = vsel %vm222, %v316, 0
    %324 = vmatprep.subr.mxu0 0.0
    %325 = vmatpush1.msra.mxu0 %v83
    %326 = vmatprep.subr.mxu0 0.0
    %327 = vmatpush1.msra.mxu0 %v84
    %328 = vmatprep.subr.mxu0 0.0
    %329 = vmatpush1.msra.mxu0 %v85
    %330 = vmatprep.subr.mxu0 0.0
    %331 = vmatpush1.msra.mxu0 %v86
    %332 = vmatprep.subr.mxu0 0.0
    %333 = vmatpush1.msra.mxu0 %v87
    %334 = vmatprep.subr.mxu0 0.0
    %335 = vmatpush1.msra.mxu0 %v88
    %336 = vmatprep.subr.mxu0 0.0
    %337 = vmatpush1.msra.mxu0 %v89
    %338 = vmatprep.subr.mxu0 0.0
    %339 = vmatpush1.msra.mxu0 %v90
    %340 = vmatprep.subr.mxu0 0.0
    %341 = vmatpush1.msra.mxu0 0.0
    %342 = vmatprep.subr.mxu0 0.0
    %343 = vmatpush1.msra.mxu0 0.0
    %344 = vmatprep.subr.mxu0 0.0
    %345 = vmatpush1.msra.mxu0 0.0
    %346 = vmatprep.subr.mxu0 0.0
    %347 = vmatpush1.msra.mxu0 0.0
    %348 = vmatprep.subr.mxu0 0.0
    %349 = vmatpush1.msra.mxu0 0.0
    %350 = vmatprep.subr.mxu0 0.0
    %351 = vmatpush1.msra.mxu0 0.0
    %352 = vmatprep.subr.mxu0 0.0
    %353 = vmatpush1.msra.mxu0 0.0
    %354 = vmatprep.subr.mxu0 0.0
    %355 = vmatpush1.msra.mxu0 0.0
    %356 = vmatprep.subr.mxu0 0.0
    %357 = vmatpush1.msra.mxu0 0.0
    %358 = vmatprep.subr.mxu0 0.0
    %359 = vmatpush1.msra.mxu0 0.0
    %360 = vmatprep.subr.mxu0 0.0
    %361 = vmatpush1.msra.mxu0 0.0
    %362 = vmatprep.subr.mxu0 0.0
    %363 = vmatpush1.msra.mxu0 0.0
    %364 = vmatprep.subr.mxu0 0.0
    %365 = vmatpush1.msra.mxu0 0.0
    %366 = vmatprep.subr.mxu0 0.0
    %367 = vmatpush1.msra.mxu0 0.0
    %368 = vmatprep.subr.mxu0 0.0
    %369 = vmatpush1.msra.mxu0 0.0
    %370 = vmatprep.subr.mxu0 0.0
    %371 = vmatpush1.msra.mxu0 0.0
    %372 = vmatprep.subr.mxu0 0.0
    %373 = vmatpush1.msra.mxu0 0.0
    %374 = vmatprep.subr.mxu0 0.0
    %375 = vmatpush1.msra.mxu0 0.0
    %376 = vmatprep.subr.mxu0 0.0
    %377 = vmatpush1.msra.mxu0 0.0
    %378 = vmatprep.subr.mxu0 0.0
    %379 = vmatpush1.msra.mxu0 0.0
    %380 = vmatprep.subr.mxu0 0.0
    %381 = vmatpush1.msra.mxu0 0.0
    %382 = vmatprep.subr.mxu0 0.0
    %383 = vmatpush1.msra.mxu0 0.0
    %384 = vmatprep.subr.mxu0 0.0
    %385 = vmatpush1.msra.mxu0 0.0
    %386 = vmatprep.subr.mxu0 0.0
    %387 = vmatpush1.msra.mxu0 0.0
    %388 = vmatprep.mubr.f32.mxu0 0.0
    %389 = vmatmul.mubr.f32.gmra.mrb[0].mxu0 %v322
    %v390 = vpop.f32.mrb[0].mxu0
    %v391 = vadd.f32 %v320, %v390
    %v392 = vpop.f32.mrb[0].mxu0
    %393 = vdwg.mxu0
    %v394 = vmax.f32 %v391, 0.0
    %v395 = vlaneseq
    %v396 = vshrl.u32 %v395, 7
    %v397 = vsub.s32 1, %v396
    %v398 = vrot.slane %v103, %v397
    %vm399 = vcmask 261120
    %v401 = vsel %vm399, %v394, 0
    %403 = vmatprep.subr.mxu0 0.0
    %404 = vmatpush1.msra.mxu0 %v91
    %405 = vmatprep.subr.mxu0 0.0
    %406 = vmatpush1.msra.mxu0 %v92
    %407 = vmatprep.subr.mxu0 0.0
    %408 = vmatpush1.msra.mxu0 %v93
    %409 = vmatprep.subr.mxu0 0.0
    %410 = vmatpush1.msra.mxu0 %v94
    %411 = vmatprep.subr.mxu0 0.0
    %412 = vmatpush1.msra.mxu0 0.0
    %413 = vmatprep.subr.mxu0 0.0
    %414 = vmatpush1.msra.mxu0 0.0
    %415 = vmatprep.subr.mxu0 0.0
    %416 = vmatpush1.msra.mxu0 0.0
    %417 = vmatprep.subr.mxu0 0.0
    %418 = vmatpush1.msra.mxu0 0.0
    %419 = vmatprep.subr.mxu0 0.0
    %420 = vmatpush1.msra.mxu0 0.0
    %421 = vmatprep.subr.mxu0 0.0
    %422 = vmatpush1.msra.mxu0 0.0
    %423 = vmatprep.subr.mxu0 0.0
    %424 = vmatpush1.msra.mxu0 0.0
    %425 = vmatprep.subr.mxu0 0.0
    %426 = vmatpush1.msra.mxu0 0.0
    %427 = vmatprep.subr.mxu0 0.0
    %428 = vmatpush1.msra.mxu0 0.0
    %429 = vmatprep.subr.mxu0 0.0
    %430 = vmatpush1.msra.mxu0 0.0
    %431 = vmatprep.subr.mxu0 0.0
    %432 = vmatpush1.msra.mxu0 0.0
    %433 = vmatprep.subr.mxu0 0.0
    %434 = vmatpush1.msra.mxu0 0.0
    %435 = vmatprep.subr.mxu0 0.0
    %436 = vmatpush1.msra.mxu0 0.0
    %437 = vmatprep.subr.mxu0 0.0
    %438 = vmatpush1.msra.mxu0 0.0
    %439 = vmatprep.subr.mxu0 0.0
    %440 = vmatpush1.msra.mxu0 0.0
    %441 = vmatprep.subr.mxu0 0.0
    %442 = vmatpush1.msra.mxu0 0.0
    %443 = vmatprep.subr.mxu0 0.0
    %444 = vmatpush1.msra.mxu0 0.0
    %445 = vmatprep.subr.mxu0 0.0
    %446 = vmatpush1.msra.mxu0 0.0
    %447 = vmatprep.subr.mxu0 0.0
    %448 = vmatpush1.msra.mxu0 0.0
    %449 = vmatprep.subr.mxu0 0.0
    %450 = vmatpush1.msra.mxu0 0.0
    %451 = vmatprep.subr.mxu0 0.0
    %452 = vmatpush1.msra.mxu0 0.0
    %453 = vmatprep.subr.mxu0 0.0
    %454 = vmatpush1.msra.mxu0 0.0
    %455 = vmatprep.subr.mxu0 0.0
    %456 = vmatpush1.msra.mxu0 0.0
    %457 = vmatprep.subr.mxu0 0.0
    %458 = vmatpush1.msra.mxu0 0.0
    %459 = vmatprep.subr.mxu0 0.0
    %460 = vmatpush1.msra.mxu0 0.0
    %461 = vmatprep.subr.mxu0 0.0
    %462 = vmatpush1.msra.mxu0 0.0
    %463 = vmatprep.subr.mxu0 0.0
    %464 = vmatpush1.msra.mxu0 0.0
    %465 = vmatprep.subr.mxu0 0.0
    %466 = vmatpush1.msra.mxu0 0.0
    %467 = vmatprep.mubr.f32.mxu0 0.0
    %468 = vmatmul.mubr.f32.gmra.mrb[0].mxu0 %v401
    %v469 = vpop.f32.mrb[0].mxu0
    %v470 = vadd.f32 %v398, %v469
    %v471 = vpop.f32.mrb[0].mxu0
    %472 = vdwg.mxu0
    %v473 = vmax.f32 %v470, 0.0
    %v474 = vmul.f32 %v473, %v473
    %v475 = vsel %vm399, %v474, 0.0
    %476 = vadd.xlane.f32.xlu0 %v475
    %v477 = vpop.xlane.xlu0 %476
    %v478 = vadd.f32 %v477, 1e-12
    %v479 = vrsqrt.pop %v478
    %v480 = vmul.f32 %v473, %v479
    %v481 = vld [vmem:[#allocation6] sm:$0xff]
    %v482 = vlaneseq
    %v483 = vshrl.u32 %v482, 7
    %v484 = vsub.s32 2, %v483
    %v485 = vrot.slane %v103, %v484
    %v487 = vsel %vm116, %v481, 0
    %489 = vmatprep.subr.mxu0 0.0
    %490 = vmatpush1.msra.mxu0 %v95
    %491 = vmatprep.subr.mxu0 0.0
    %492 = vmatpush1.msra.mxu0 %v96
    %493 = vmatprep.subr.mxu0 0.0
    %494 = vmatpush1.msra.mxu0 0.0
    %495 = vmatprep.subr.mxu0 0.0
    %496 = vmatpush1.msra.mxu0 0.0
    %497 = vmatprep.subr.mxu0 0.0
    %498 = vmatpush1.msra.mxu0 0.0
    %499 = vmatprep.subr.mxu0 0.0
    %500 = vmatpush1.msra.mxu0 0.0
    %501 = vmatprep.subr.mxu0 0.0
    %502 = vmatpush1.msra.mxu0 0.0
    %503 = vmatprep.subr.mxu0 0.0
    %504 = vmatpush1.msra.mxu0 0.0
    %505 = vmatprep.subr.mxu0 0.0
    %506 = vmatpush1.msra.mxu0 0.0
    %507 = vmatprep.subr.mxu0 0.0
    %508 = vmatpush1.msra.mxu0 0.0
    %509 = vmatprep.subr.mxu0 0.0
    %510 = vmatpush1.msra.mxu0 0.0
    %511 = vmatprep.subr.mxu0 0.0
    %512 = vmatpush1.msra.mxu0 0.0
    %513 = vmatprep.subr.mxu0 0.0
    %514 = vmatpush1.msra.mxu0 0.0
    %515 = vmatprep.subr.mxu0 0.0
    %516 = vmatpush1.msra.mxu0 0.0
    %517 = vmatprep.subr.mxu0 0.0
    %518 = vmatpush1.msra.mxu0 0.0
    %519 = vmatprep.subr.mxu0 0.0
    %520 = vmatpush1.msra.mxu0 0.0
    %521 = vmatprep.subr.mxu0 0.0
    %522 = vmatpush1.msra.mxu0 0.0
    %523 = vmatprep.subr.mxu0 0.0
    %524 = vmatpush1.msra.mxu0 0.0
    %525 = vmatprep.subr.mxu0 0.0
    %526 = vmatpush1.msra.mxu0 0.0
    %527 = vmatprep.subr.mxu0 0.0
    %528 = vmatpush1.msra.mxu0 0.0
    %529 = vmatprep.subr.mxu0 0.0
    %530 = vmatpush1.msra.mxu0 0.0
    %531 = vmatprep.subr.mxu0 0.0
    %532 = vmatpush1.msra.mxu0 0.0
    %533 = vmatprep.subr.mxu0 0.0
    %534 = vmatpush1.msra.mxu0 0.0
    %535 = vmatprep.subr.mxu0 0.0
    %536 = vmatpush1.msra.mxu0 0.0
    %537 = vmatprep.subr.mxu0 0.0
    %538 = vmatpush1.msra.mxu0 0.0
    %539 = vmatprep.subr.mxu0 0.0
    %540 = vmatpush1.msra.mxu0 0.0
    %541 = vmatprep.subr.mxu0 0.0
    %542 = vmatpush1.msra.mxu0 0.0
    %543 = vmatprep.subr.mxu0 0.0
    %544 = vmatpush1.msra.mxu0 0.0
    %545 = vmatprep.subr.mxu0 0.0
    %546 = vmatpush1.msra.mxu0 0.0
    %547 = vmatprep.subr.mxu0 0.0
    %548 = vmatpush1.msra.mxu0 0.0
    %549 = vmatprep.subr.mxu0 0.0
    %550 = vmatpush1.msra.mxu0 0.0
    %551 = vmatprep.subr.mxu0 0.0
    %552 = vmatpush1.msra.mxu0 0.0
    %553 = vmatprep.mubr.f32.mxu0 0.0
    %554 = vmatmul.mubr.f32.gmra.mrb[0].mxu0 %v487
    %v555 = vpop.f32.mrb[0].mxu0
    %v556 = vadd.f32 %v485, %v555
    %v557 = vpop.f32.mrb[0].mxu0
    %558 = vdwg.mxu0
    %v559 = vmax.f32 %v556, 0.0
    %v560 = vlaneseq
    %v561 = vshrl.u32 %v560, 7
    %v562 = vsub.s32 3, %v561
    %v563 = vrot.slane %v103, %v562
    %v565 = vsel %vm399, %v559, 0
    %567 = vmatprep.subr.mxu0 0.0
    %568 = vmatpush1.msra.mxu0 %v97
    %569 = vmatprep.subr.mxu0 0.0
    %570 = vmatpush1.msra.mxu0 %v98
    %571 = vmatprep.subr.mxu0 0.0
    %572 = vmatpush1.msra.mxu0 %v99
    %573 = vmatprep.subr.mxu0 0.0
    %574 = vmatpush1.msra.mxu0 %v100
    %575 = vmatprep.subr.mxu0 0.0
    %576 = vmatpush1.msra.mxu0 0.0
    %577 = vmatprep.subr.mxu0 0.0
    %578 = vmatpush1.msra.mxu0 0.0
    %579 = vmatprep.subr.mxu0 0.0
    %580 = vmatpush1.msra.mxu0 0.0
    %581 = vmatprep.subr.mxu0 0.0
    %582 = vmatpush1.msra.mxu0 0.0
    %583 = vmatprep.subr.mxu0 0.0
    %584 = vmatpush1.msra.mxu0 0.0
    %585 = vmatprep.subr.mxu0 0.0
    %586 = vmatpush1.msra.mxu0 0.0
    %587 = vmatprep.subr.mxu0 0.0
    %588 = vmatpush1.msra.mxu0 0.0
    %589 = vmatprep.subr.mxu0 0.0
    %590 = vmatpush1.msra.mxu0 0.0
    %591 = vmatprep.subr.mxu0 0.0
    %592 = vmatpush1.msra.mxu0 0.0
    %593 = vmatprep.subr.mxu0 0.0
    %594 = vmatpush1.msra.mxu0 0.0
    %595 = vmatprep.subr.mxu0 0.0
    %596 = vmatpush1.msra.mxu0 0.0
    %597 = vmatprep.subr.mxu0 0.0
    %598 = vmatpush1.msra.mxu0 0.0
    %599 = vmatprep.subr.mxu0 0.0
    %600 = vmatpush1.msra.mxu0 0.0
    %601 = vmatprep.subr.mxu0 0.0
    %602 = vmatpush1.msra.mxu0 0.0
    %603 = vmatprep.subr.mxu0 0.0
    %604 = vmatpush1.msra.mxu0 0.0
    %605 = vmatprep.subr.mxu0 0.0
    %606 = vmatpush1.msra.mxu0 0.0
    %607 = vmatprep.subr.mxu0 0.0
    %608 = vmatpush1.msra.mxu0 0.0
    %609 = vmatprep.subr.mxu0 0.0
    %610 = vmatpush1.msra.mxu0 0.0
    %611 = vmatprep.subr.mxu0 0.0
    %612 = vmatpush1.msra.mxu0 0.0
    %613 = vmatprep.subr.mxu0 0.0
    %614 = vmatpush1.msra.mxu0 0.0
    %615 = vmatprep.subr.mxu0 0.0
    %616 = vmatpush1.msra.mxu0 0.0
    %617 = vmatprep.subr.mxu0 0.0
    %618 = vmatpush1.msra.mxu0 0.0
    %619 = vmatprep.subr.mxu0 0.0
    %620 = vmatpush1.msra.mxu0 0.0
    %621 = vmatprep.subr.mxu0 0.0
    %622 = vmatpush1.msra.mxu0 0.0
    %623 = vmatprep.subr.mxu0 0.0
    %624 = vmatpush1.msra.mxu0 0.0
    %625 = vmatprep.subr.mxu0 0.0
    %626 = vmatpush1.msra.mxu0 0.0
    %627 = vmatprep.subr.mxu0 0.0
    %628 = vmatpush1.msra.mxu0 0.0
    %629 = vmatprep.subr.mxu0 0.0
    %630 = vmatpush1.msra.mxu0 0.0
    %631 = vmatprep.mubr.f32.mxu0 0.0
    %632 = vmatmul.mubr.f32.gmra.mrb[0].mxu0 %v565
    %v633 = vpop.f32.mrb[0].mxu0
    %v634 = vadd.f32 %v563, %v633
    %v635 = vpop.f32.mrb[0].mxu0
    %636 = vdwg.mxu0
    %v637 = vmax.f32 %v634, 0.0
    %v638 = vmul.f32 %v637, %v637
    %v639 = vsel %vm399, %v638, 0.0
    %640 = vadd.xlane.f32.xlu0 %v639
    %v641 = vpop.xlane.xlu0 %640
    %v642 = vadd.f32 %v641, 1e-12
    %v643 = vrsqrt.pop %v642
    %v644 = vmul.f32 %v637, %v643
    %v645 = vmul.f32 %v480, 0.5
    %v646 = vmul.f32 %v644, 0.5
    %v647 = vadd.f32 %v645, %v646
    %v648 = vld [vmem:[%s3] sm:$0xff]
    %v649 = vlaneseq
    %v650 = vshrl.u32 %v649, 7
    %v651 = vsub.s32 4, %v650
    %v652 = vrot.slane %v103, %v651
    %v654 = vsel %vm116, %v648, 0
    %656 = vmatprep.subr.mxu0 0.0
    %657 = vmatpush1.msra.mxu0 %v101
    %658 = vmatprep.subr.mxu0 0.0
    %659 = vmatpush1.msra.mxu0 %v102
    %660 = vmatprep.subr.mxu0 0.0
    %661 = vmatpush1.msra.mxu0 0.0
    %662 = vmatprep.subr.mxu0 0.0
    %663 = vmatpush1.msra.mxu0 0.0
    %664 = vmatprep.subr.mxu0 0.0
    %665 = vmatpush1.msra.mxu0 0.0
    %666 = vmatprep.subr.mxu0 0.0
    %667 = vmatpush1.msra.mxu0 0.0
    %668 = vmatprep.subr.mxu0 0.0
    %669 = vmatpush1.msra.mxu0 0.0
    %670 = vmatprep.subr.mxu0 0.0
    %671 = vmatpush1.msra.mxu0 0.0
    %672 = vmatprep.subr.mxu0 0.0
    %673 = vmatpush1.msra.mxu0 0.0
    %674 = vmatprep.subr.mxu0 0.0
    %675 = vmatpush1.msra.mxu0 0.0
    %676 = vmatprep.subr.mxu0 0.0
    %677 = vmatpush1.msra.mxu0 0.0
    %678 = vmatprep.subr.mxu0 0.0
    %679 = vmatpush1.msra.mxu0 0.0
    %680 = vmatprep.subr.mxu0 0.0
    %681 = vmatpush1.msra.mxu0 0.0
    %682 = vmatprep.subr.mxu0 0.0
    %683 = vmatpush1.msra.mxu0 0.0
    %684 = vmatprep.subr.mxu0 0.0
    %685 = vmatpush1.msra.mxu0 0.0
    %686 = vmatprep.subr.mxu0 0.0
    %687 = vmatpush1.msra.mxu0 0.0
    %688 = vmatprep.subr.mxu0 0.0
    %689 = vmatpush1.msra.mxu0 0.0
    %690 = vmatprep.subr.mxu0 0.0
    %691 = vmatpush1.msra.mxu0 0.0
    %692 = vmatprep.subr.mxu0 0.0
    %693 = vmatpush1.msra.mxu0 0.0
    %694 = vmatprep.subr.mxu0 0.0
    %695 = vmatpush1.msra.mxu0 0.0
    %696 = vmatprep.subr.mxu0 0.0
    %697 = vmatpush1.msra.mxu0 0.0
    %698 = vmatprep.subr.mxu0 0.0
    %699 = vmatpush1.msra.mxu0 0.0
    %700 = vmatprep.subr.mxu0 0.0
    %701 = vmatpush1.msra.mxu0 0.0
    %702 = vmatprep.subr.mxu0 0.0
    %703 = vmatpush1.msra.mxu0 0.0
    %704 = vmatprep.subr.mxu0 0.0
    %705 = vmatpush1.msra.mxu0 0.0
    %706 = vmatprep.subr.mxu0 0.0
    %707 = vmatpush1.msra.mxu0 0.0
    %708 = vmatprep.subr.mxu0 0.0
    %709 = vmatpush1.msra.mxu0 0.0
    %710 = vmatprep.subr.mxu0 0.0
    %711 = vmatpush1.msra.mxu0 0.0
    %712 = vmatprep.subr.mxu0 0.0
    %713 = vmatpush1.msra.mxu0 0.0
    %714 = vmatprep.subr.mxu0 0.0
    %715 = vmatpush1.msra.mxu0 0.0
    %716 = vmatprep.subr.mxu0 0.0
    %717 = vmatpush1.msra.mxu0 0.0
    %718 = vmatprep.subr.mxu0 0.0
    %719 = vmatpush1.msra.mxu0 0.0
    %720 = vmatprep.mubr.f32.mxu0 0.0
    %721 = vmatmul.mubr.f32.gmra.mrb[0].mxu0 %v654
    %v722 = vpop.f32.mrb[0].mxu0
    %v723 = vadd.f32 %v652, %v722
    %v724 = vpop.f32.mrb[0].mxu0
    %725 = vdwg.mxu0
    %v726 = vmul.f32 %v723, %v723
    %v727 = vsel %vm399, %v726, 0.0
    %728 = vadd.xlane.f32.xlu0 %v727
    %v729 = vpop.xlane.xlu0 %728
    %v730 = vadd.f32 %v729, 1e-12
    %v731 = vrsqrt.pop %v730
    %v732 = vmul.f32 %v723, %v731
    %s733 = sld [smem:[#allocation2]]
    %v734 = vstv %s733
    %v735 = vmul.f32 %v732, %v734
    %v737 = vsel %vm399, %v647, 0
    %v740 = vsel %vm399, %v735, 0
    %742 = vmatprep.subr.mxu0 0.0
    %743 = vmatpush1.xpose.msra.mxu0 %v740
    %744 = vmatprep.subr.mxu0 0.0
    %745 = vmatpush1.xpose.msra.mxu0 0.0
    %746 = vmatprep.subr.mxu0 0.0
    %747 = vmatpush1.xpose.msra.mxu0 0.0
    %748 = vmatprep.subr.mxu0 0.0
    %749 = vmatpush1.xpose.msra.mxu0 0.0
    %750 = vmatprep.subr.mxu0 0.0
    %751 = vmatpush1.xpose.msra.mxu0 0.0
    %752 = vmatprep.subr.mxu0 0.0
    %753 = vmatpush1.xpose.msra.mxu0 0.0
    %754 = vmatprep.subr.mxu0 0.0
    %755 = vmatpush1.xpose.msra.mxu0 0.0
    %756 = vmatprep.subr.mxu0 0.0
    %757 = vmatpush1.xpose.msra.mxu0 0.0
    %758 = vmatprep.subr.mxu0 0.0
    %759 = vmatpush1.xpose.msra.mxu0 0.0
    %760 = vmatprep.subr.mxu0 0.0
    %761 = vmatpush1.xpose.msra.mxu0 0.0
    %762 = vmatprep.subr.mxu0 0.0
    %763 = vmatpush1.xpose.msra.mxu0 0.0
    %764 = vmatprep.subr.mxu0 0.0
    %765 = vmatpush1.xpose.msra.mxu0 0.0
    %766 = vmatprep.subr.mxu0 0.0
    %767 = vmatpush1.xpose.msra.mxu0 0.0
    %768 = vmatprep.subr.mxu0 0.0
    %769 = vmatpush1.xpose.msra.mxu0 0.0
    %770 = vmatprep.subr.mxu0 0.0
    %771 = vmatpush1.xpose.msra.mxu0 0.0
    %772 = vmatprep.subr.mxu0 0.0
    %773 = vmatpush1.xpose.msra.mxu0 0.0
    %774 = vmatprep.subr.mxu0 0.0
    %775 = vmatpush1.xpose.msra.mxu0 0.0
    %776 = vmatprep.subr.mxu0 0.0
    %777 = vmatpush1.xpose.msra.mxu0 0.0
    %778 = vmatprep.subr.mxu0 0.0
    %779 = vmatpush1.xpose.msra.mxu0 0.0
    %780 = vmatprep.subr.mxu0 0.0
    %781 = vmatpush1.xpose.msra.mxu0 0.0
    %782 = vmatprep.subr.mxu0 0.0
    %783 = vmatpush1.xpose.msra.mxu0 0.0
    %784 = vmatprep.subr.mxu0 0.0
    %785 = vmatpush1.xpose.msra.mxu0 0.0
    %786 = vmatprep.subr.mxu0 0.0
    %787 = vmatpush1.xpose.msra.mxu0 0.0
    %788 = vmatprep.subr.mxu0 0.0
    %789 = vmatpush1.xpose.msra.mxu0 0.0
    %790 = vmatprep.subr.mxu0 0.0
    %791 = vmatpush1.xpose.msra.mxu0 0.0
    %792 = vmatprep.subr.mxu0 0.0
    %793 = vmatpush1.xpose.msra.mxu0 0.0
    %794 = vmatprep.subr.mxu0 0.0
    %795 = vmatpush1.xpose.msra.mxu0 0.0
    %796 = vmatprep.subr.mxu0 0.0
    %797 = vmatpush1.xpose.msra.mxu0 0.0
    %798 = vmatprep.subr.mxu0 0.0
    %799 = vmatpush1.xpose.msra.mxu0 0.0
    %800 = vmatprep.subr.mxu0 0.0
    %801 = vmatpush1.xpose.msra.mxu0 0.0
    %802 = vmatprep.subr.mxu0 0.0
    %803 = vmatpush1.xpose.msra.mxu0 0.0
    %804 = vmatprep.subr.mxu0 0.0
    %805 = vmatpush1.xpose.msra.mxu0 0.0
    %806 = vmatprep.mubr.f32.mxu0 0.0
    %807 = vmatmul.mubr.f32.gmra.mrb[0].mxu0 %v737
    %v808 = vpop.f32.mrb[0].mxu0
    %v809 = vadd.f32 0.0, %v808
    %v810 = vpop.f32.mrb[0].mxu0
    %811 = vdwg.mxu0
    %vm812 = vcmask 64512
    %813 = vst.msk [vmem:[#allocation9] sm:$0xff] %vm812, %v809
    // Predicated region
    $region34: #{tpu_custom_call.1} parent=1 // pred_check
      _
    $region35: #{tpu_custom_call.1} parent=1 // pred_check_branch
      %815 = sbr.rel (0) target = $region37
    $region36: #{tpu_custom_call.1} parent=1 // pred_region
      %s817 = ssub.s32 128, 128
      %818 = vsyncadd [#allocation5], %s817
      %s820 = sshll.u32 [#allocation9], 4
      %s821 = int_to_ptr.vmem [resolvable:$true] %s820
      %823 = dma.vmem_to_hbm [thread:$0]  %s821, 128, %s5, [#allocation5]
    $region37: #{tpu_custom_call.1} parent=1 // pred_fallthru
      _
    // Predicated region
    $region38: #{tpu_custom_call.1} parent=1 // pred_check
      _
    $region39: #{tpu_custom_call.1} parent=1 // pred_check_branch
      %825 = sbr.rel (0) target = $region41
    $region40: #{tpu_custom_call.1} parent=1 // pred_region
      %826 = dma.done [#allocation5], 128
    $region41: #{tpu_custom_call.1} parent=1 // pred_fallthru
      _
    %827 = vsyncpa [#allocation4], 1
    %828 = vsyncpa [#allocation7], 1
    %829 = vsyncpa [#allocation5], 1

</llo_original>
